<compile_context>
chip_gen: v6e
topology: v6e:2x2x1
jax: 0.10.0
libtpu: 0.0.40
codegen_flags: <defaults>
</compile_context>

<pallas_src>
import jax
import jax.numpy as jnp
from jax.experimental import pallas as pl
from jax.experimental.pallas import tpu as pltpu

IN_FEATURES = 6
HIDDEN = 50
HIDDEN_PAD = 56          # next multiple of 8 above 50
OUT_FEATURES = 2
LANE = 128
MAX_TILE_B = 32768       # keeps 56*tb*4B h-temp + double-buffered x/out tiles
                         # well under the default scoped VMEM (v5e 16 MiB).


def _round_up(n, m):
    return ((n + m - 1) // m) * m


def _net_kernel(x_ref, w1_ref, b1_ref, w2_ref, b2_ref, o_ref):
    # x_ref:  (6, TB)   batch on the lane axis (lane-dense loads)
    # w1_ref: (56, 6)   b1_ref: (56, 1)
    # w2_ref: (2, 56)   b2_ref: (2, 1)
    # o_ref:  (2, TB)   lane-dense store
    x = x_ref[...]

    # ---- fc1 + ReLU on the VPU --------------------------------------------
    # K=6 is far too small for the MXU (push cadence >> HBM time); do six
    # unrolled broadcast multiply-adds instead.  w1[:, k:k+1] broadcasts over
    # lanes, x[k:k+1, :] broadcasts over sublanes -> (56, TB) accumulate.
    h = b1_ref[...] + w1_ref[:, 0:1] * x[0:1, :]
    for k in range(1, IN_FEATURES):
        h = h + w1_ref[:, k:k + 1] * x[k:k + 1, :]
    h = jnp.maximum(h, 0.0)                                   # (56, TB)

    # ---- fc2 on the MXU (tiny; the MXU slot is otherwise idle now) ---------
    z = jnp.dot(w2_ref[...], h, preferred_element_type=jnp.float32)
    z = z + b2_ref[...]                                       # (2, TB)

    # ---- 2-class log_softmax, stable, 1 exp + 1 log on the EUP -------------
    z0 = z[0:1, :]
    z1 = z[1:2, :]
    m = jnp.maximum(z0, z1)                                   # (1, TB)
    lse = m + jnp.log(1.0 + jnp.exp(-jnp.abs(z0 - z1)))       # (1, TB)
    o_ref[...] = z - lse                                      # lane-dense vst


def net_forward(x, w1, b1, w2, b2, *, tile_b=16384, feature_major_out=False):
    """Forward pass of Net.

    x  : (B, 6)  float32
    w1 : (50, 6) float32   (PyTorch fc1.weight layout)
    b1 : (50,)   float32
    w2 : (2, 50) float32   (PyTorch fc2.weight layout)
    b2 : (2,)    float32
    Returns (B, 2) log-probabilities (PyTorch convention), or (2, B) if
    feature_major_out=True (skips the final relayout pass for consumers that
    can take feature-major output).
    """
    x = x.astype(jnp.float32)
    B, f_in = x.shape
    assert f_in == IN_FEATURES

    # ---- weights: pad hidden dim 50 -> 56 (zero padding is inert:
    # padded W1/b1 rows give ReLU(0)=0; matching W2 columns are zero). --------
    w1p = jnp.zeros((HIDDEN_PAD, IN_FEATURES), jnp.float32).at[:HIDDEN].set(w1)
    b1p = jnp.zeros((HIDDEN_PAD, 1), jnp.float32).at[:HIDDEN, 0].set(b1)
    w2p = jnp.zeros((OUT_FEATURES, HIDDEN_PAD), jnp.float32).at[:, :HIDDEN].set(w2)
    b2p = b2.reshape(OUT_FEATURES, 1).astype(jnp.float32)

    # ---- tail-balanced batch tiling: pick the grid first, then the smallest
    # 128-aligned tile covering it (bounds batch padding to < 128*grid_b). ----
    tile_b = min(max(int(tile_b), LANE), MAX_TILE_B)
    grid_b = pl.cdiv(B, tile_b)
    if B >= 2 * LANE:
        grid_b = max(grid_b, 2)     # give v7x's second TensorCore work
    tb = _round_up(pl.cdiv(B, grid_b), LANE)
    bp = grid_b * tb

    # ---- feature-major input: batch on lanes inside the kernel. Transpose
    # once and pad only the tail lanes (no full-buffer zero-init + scatter). --
    # TODO(synk): callers that already hold x feature-major can pass it
    # straight to the pallas_call and skip this transpose entirely.
    x_t = x.T
    if bp != B:
        x_t = jnp.pad(x_t, ((0, 0), (0, bp - B)))

    out_t = pl.pallas_call(
        _net_kernel,
        out_shape=jax.ShapeDtypeStruct((OUT_FEATURES, bp), jnp.float32),
        grid_spec=pl.GridSpec(
            grid=(grid_b,),
            in_specs=[
                # x tile slides along the batch (lane) axis.
                pl.BlockSpec((IN_FEATURES, tb), lambda i: (0, i)),
                # Weights / biases: constant index_map -> VMEM-resident.
                pl.BlockSpec((HIDDEN_PAD, IN_FEATURES), lambda i: (0, 0)),
                pl.BlockSpec((HIDDEN_PAD, 1), lambda i: (0, 0)),
                pl.BlockSpec((OUT_FEATURES, HIDDEN_PAD), lambda i: (0, 0)),
                pl.BlockSpec((OUT_FEATURES, 1), lambda i: (0, 0)),
            ],
            out_specs=pl.BlockSpec((OUT_FEATURES, tb), lambda i: (0, i)),
        ),
        compiler_params=pltpu.CompilerParams(
            dimension_semantics=("parallel",),   # shard batch tiles across TCs
        ),
    )(x_t, w1p, b1p, w2p, b2p)

    out_t = out_t[:, :B]
    if feature_major_out:
        return out_t                  # (2, B): no extra relayout pass
    return out_t.T                    # PyTorch convention (B, 2)


def init_params(key):
    """Deterministic init mirroring nn.Linear (PyTorch weight layout)."""
    k1, k2, k3, k4 = jax.random.split(key, 4)
    bound1 = 1.0 / jnp.sqrt(float(IN_FEATURES))
    w1 = jax.random.uniform(k1, (HIDDEN, IN_FEATURES), jnp.float32, -bound1, bound1)
    b1 = jax.random.uniform(k2, (HIDDEN,), jnp.float32, -bound1, bound1)
    bound2 = 1.0 / jnp.sqrt(float(HIDDEN))
    w2 = jax.random.uniform(k3, (OUT_FEATURES, HIDDEN), jnp.float32, -bound2, bound2)
    b2 = jax.random.uniform(k4, (OUT_FEATURES,), jnp.float32, -bound2, bound2)
    return w1, b1, w2, b2


def _reference(x, w1, b1, w2, b2):
    h = jnp.maximum(x @ w1.T + b1, 0.0)
    z = h @ w2.T + b2
    return jax.nn.log_softmax(z, axis=-1)


if __name__ == "__main__":
    key = jax.random.PRNGKey(0)
    k_x, k_x2, k_p = jax.random.split(key, 3)
    w1, b1, w2, b2 = init_params(k_p)

    # Small batch (single grid step, single 128-lane tile).
    B = 8
    x = jax.random.normal(k_x, (B, IN_FEATURES), dtype=jnp.float32)
    out = jax.block_until_ready(net_forward(x, w1, b1, w2, b2))
    assert out.shape == (B, OUT_FEATURES)
    assert jnp.allclose(out, _reference(x, w1, b1, w2, b2), atol=1e-5, rtol=1e-5)

    # Multi-tile path: non-multiple batch, >=2 grid steps, resident weights.
    B2 = 300
    x2 = jax.random.normal(k_x2, (B2, IN_FEATURES), dtype=jnp.float32)
    out2 = jax.block_until_ready(net_forward(x2, w1, b1, w2, b2, tile_b=128))
    assert out2.shape == (B2, OUT_FEATURES)
    assert jnp.allclose(out2, _reference(x2, w1, b1, w2, b2), atol=1e-5, rtol=1e-5)

    # Feature-major output fast path (skips the final relayout).
    out2_fm = jax.block_until_ready(
        net_forward(x2, w1, b1, w2, b2, feature_major_out=True))
    assert out2_fm.shape == (OUT_FEATURES, B2)
    assert jnp.allclose(out2_fm.T, out2, atol=1e-6, rtol=1e-6)

    print("KERNEL_OK")
</pallas_src>

<mosaic_0001>
module attributes {stable_mosaic.version = 11 : i64} {
  func.func @_net_kernel(%arg0: i32, %arg1: memref<6x128xf32, #tpu.memory_space<vmem>>, %arg2: memref<56x6xf32, #tpu.memory_space<vmem>>, %arg3: memref<56x1xf32, #tpu.memory_space<vmem>>, %arg4: memref<2x56xf32, #tpu.memory_space<vmem>>, %arg5: memref<2x1xf32, #tpu.memory_space<vmem>>, %arg6: memref<2x128xf32, #tpu.memory_space<vmem>>) attributes {dimension_semantics = [#tpu.dimension_semantics<parallel>], iteration_bounds = array<i64: 1>, scalar_prefetch = 0 : i64, scratch_operands = 0 : i64, tpu.core_type = #tpu.core_type<tc>, window_params = [{transform_indices = @transform_0, window_bounds = array<i64: 6, 128>}, {pipeline_mode = #tpu.pipeline_mode<synchronous>, transform_indices = @transform_1, window_bounds = array<i64: 56, 6>}, {pipeline_mode = #tpu.pipeline_mode<synchronous>, transform_indices = @transform_2, window_bounds = array<i64: 56, 1>}, {pipeline_mode = #tpu.pipeline_mode<synchronous>, transform_indices = @transform_3, window_bounds = array<i64: 2, 56>}, {pipeline_mode = #tpu.pipeline_mode<synchronous>, transform_indices = @transform_4, window_bounds = array<i64: 2, 1>}, {transform_indices = @transform_5, window_bounds = array<i64: 2, 128>}]} {
    %c0 = arith.constant 0 : index
    %c0_0 = arith.constant 0 : index
    %0 = vector.load %arg1[%c0, %c0_0] : memref<6x128xf32, #tpu.memory_space<vmem>>, vector<6x128xf32>
    %c0_1 = arith.constant 0 : index
    %c0_2 = arith.constant 0 : index
    %1 = vector.load %arg3[%c0_1, %c0_2] : memref<56x1xf32, #tpu.memory_space<vmem>>, vector<56x1xf32>
    %c0_3 = arith.constant 0 : index
    %c0_4 = arith.constant 0 : index
    %2 = vector.load %arg2[%c0_3, %c0_4] : memref<56x6xf32, #tpu.memory_space<vmem>>, vector<56x1xf32>
    %3 = vector.extract_strided_slice %0 {offsets = [0, 0], sizes = [1, 128], strides = [1, 1]} : vector<6x128xf32> to vector<1x128xf32>
    %4 = vector.broadcast %2 : vector<56x1xf32> to vector<56x128xf32>
    %5 = vector.broadcast %3 : vector<1x128xf32> to vector<56x128xf32>
    %6 = arith.mulf %4, %5 : vector<56x128xf32>
    %7 = vector.broadcast %1 : vector<56x1xf32> to vector<56x128xf32>
    %8 = arith.addf %7, %6 : vector<56x128xf32>
    %c0_5 = arith.constant 0 : index
    %c1 = arith.constant 1 : index
    %9 = vector.load %arg2[%c0_5, %c1] : memref<56x6xf32, #tpu.memory_space<vmem>>, vector<56x1xf32>
    %10 = vector.extract_strided_slice %0 {offsets = [1, 0], sizes = [1, 128], strides = [1, 1]} : vector<6x128xf32> to vector<1x128xf32>
    %11 = vector.broadcast %9 : vector<56x1xf32> to vector<56x128xf32>
    %12 = vector.broadcast %10 : vector<1x128xf32> to vector<56x128xf32>
    %13 = arith.mulf %11, %12 : vector<56x128xf32>
    %14 = arith.addf %8, %13 : vector<56x128xf32>
    %c0_6 = arith.constant 0 : index
    %c2 = arith.constant 2 : index
    %15 = vector.load %arg2[%c0_6, %c2] : memref<56x6xf32, #tpu.memory_space<vmem>>, vector<56x1xf32>
    %16 = vector.extract_strided_slice %0 {offsets = [2, 0], sizes = [1, 128], strides = [1, 1]} : vector<6x128xf32> to vector<1x128xf32>
    %17 = vector.broadcast %15 : vector<56x1xf32> to vector<56x128xf32>
    %18 = vector.broadcast %16 : vector<1x128xf32> to vector<56x128xf32>
    %19 = arith.mulf %17, %18 : vector<56x128xf32>
    %20 = arith.addf %14, %19 : vector<56x128xf32>
    %c0_7 = arith.constant 0 : index
    %c3 = arith.constant 3 : index
    %21 = vector.load %arg2[%c0_7, %c3] : memref<56x6xf32, #tpu.memory_space<vmem>>, vector<56x1xf32>
    %22 = vector.extract_strided_slice %0 {offsets = [3, 0], sizes = [1, 128], strides = [1, 1]} : vector<6x128xf32> to vector<1x128xf32>
    %23 = vector.broadcast %21 : vector<56x1xf32> to vector<56x128xf32>
    %24 = vector.broadcast %22 : vector<1x128xf32> to vector<56x128xf32>
    %25 = arith.mulf %23, %24 : vector<56x128xf32>
    %26 = arith.addf %20, %25 : vector<56x128xf32>
    %c0_8 = arith.constant 0 : index
    %c4 = arith.constant 4 : index
    %27 = vector.load %arg2[%c0_8, %c4] : memref<56x6xf32, #tpu.memory_space<vmem>>, vector<56x1xf32>
    %28 = vector.extract_strided_slice %0 {offsets = [4, 0], sizes = [1, 128], strides = [1, 1]} : vector<6x128xf32> to vector<1x128xf32>
    %29 = vector.broadcast %27 : vector<56x1xf32> to vector<56x128xf32>
    %30 = vector.broadcast %28 : vector<1x128xf32> to vector<56x128xf32>
    %31 = arith.mulf %29, %30 : vector<56x128xf32>
    %32 = arith.addf %26, %31 : vector<56x128xf32>
    %c0_9 = arith.constant 0 : index
    %c5 = arith.constant 5 : index
    %33 = vector.load %arg2[%c0_9, %c5] : memref<56x6xf32, #tpu.memory_space<vmem>>, vector<56x1xf32>
    %34 = vector.extract_strided_slice %0 {offsets = [5, 0], sizes = [1, 128], strides = [1, 1]} : vector<6x128xf32> to vector<1x128xf32>
    %35 = vector.broadcast %33 : vector<56x1xf32> to vector<56x128xf32>
    %36 = vector.broadcast %34 : vector<1x128xf32> to vector<56x128xf32>
    %37 = arith.mulf %35, %36 : vector<56x128xf32>
    %38 = arith.addf %32, %37 : vector<56x128xf32>
    %cst = arith.constant 0.000000e+00 : f32
    %39 = vector.broadcast %cst : f32 to vector<56x128xf32>
    %40 = arith.maximumf %38, %39 : vector<56x128xf32>
    %c0_10 = arith.constant 0 : index
    %c0_11 = arith.constant 0 : index
    %41 = vector.load %arg4[%c0_10, %c0_11] : memref<2x56xf32, #tpu.memory_space<vmem>>, vector<2x56xf32>
    %cst_12 = arith.constant dense<0.000000e+00> : vector<2x128xf32>
    %42 = tpu.matmul %41, %40, %cst_12 {dimension_numbers = #tpu.dot_dimension_numbers<[1], [0], [0], [1], [0, 0, 1, 1], [], []>} : vector<2x56xf32>, vector<56x128xf32>, vector<2x128xf32> -> vector<2x128xf32>
    %c0_13 = arith.constant 0 : index
    %c0_14 = arith.constant 0 : index
    %43 = vector.load %arg5[%c0_13, %c0_14] : memref<2x1xf32, #tpu.memory_space<vmem>>, vector<2x1xf32>
    %44 = vector.broadcast %43 : vector<2x1xf32> to vector<2x128xf32>
    %45 = arith.addf %42, %44 : vector<2x128xf32>
    %46 = vector.extract_strided_slice %45 {offsets = [0, 0], sizes = [1, 128], strides = [1, 1]} : vector<2x128xf32> to vector<1x128xf32>
    %47 = vector.extract_strided_slice %45 {offsets = [1, 0], sizes = [1, 128], strides = [1, 1]} : vector<2x128xf32> to vector<1x128xf32>
    %48 = arith.maximumf %46, %47 : vector<1x128xf32>
    %49 = arith.subf %46, %47 : vector<1x128xf32>
    %50 = math.absf %49 : vector<1x128xf32>
    %cst_15 = arith.constant 0.000000e+00 : f32
    %51 = vector.broadcast %cst_15 : f32 to vector<1x128xf32>
    %52 = arith.subf %51, %50 : vector<1x128xf32>
    %53 = math.exp %52 : vector<1x128xf32>
    %cst_16 = arith.constant 1.000000e+00 : f32
    %54 = vector.broadcast %cst_16 : f32 to vector<1x128xf32>
    %55 = arith.addf %54, %53 : vector<1x128xf32>
    %56 = math.log %55 : vector<1x128xf32>
    %57 = arith.addf %48, %56 : vector<1x128xf32>
    %58 = vector.broadcast %57 : vector<1x128xf32> to vector<2x128xf32>
    %59 = arith.subf %45, %58 : vector<2x128xf32>
    %c0_17 = arith.constant 0 : index
    %c0_18 = arith.constant 0 : index
    %60 = vector.load %arg6[%c0_17, %c0_18] : memref<2x128xf32, #tpu.memory_space<vmem>>, vector<2x128xf32>
    tpu.vector_store %arg6[%c0_17, %c0_18], %59 {strides = array<i32>} : memref<2x128xf32, #tpu.memory_space<vmem>>, vector<2x128xf32>,
    return
  }
  func.func @transform_0(%arg0: i32) -> (i32, i32) {
    %c0_i32 = arith.constant 0 : i32
    %c0_i32_0 = arith.constant 0 : i32
    return %c0_i32, %arg0 : i32, i32
  }
  func.func @transform_1(%arg0: i32) -> (i32, i32) {
    %c0_i32 = arith.constant 0 : i32
    %c0_i32_0 = arith.constant 0 : i32
    %c0_i32_1 = arith.constant 0 : i32
    return %c0_i32, %c0_i32_0 : i32, i32
  }
  func.func @transform_2(%arg0: i32) -> (i32, i32) {
    %c0_i32 = arith.constant 0 : i32
    %c0_i32_0 = arith.constant 0 : i32
    %c0_i32_1 = arith.constant 0 : i32
    return %c0_i32, %c0_i32_0 : i32, i32
  }
  func.func @transform_3(%arg0: i32) -> (i32, i32) {
    %c0_i32 = arith.constant 0 : i32
    %c0_i32_0 = arith.constant 0 : i32
    %c0_i32_1 = arith.constant 0 : i32
    return %c0_i32, %c0_i32_0 : i32, i32
  }
  func.func @transform_4(%arg0: i32) -> (i32, i32) {
    %c0_i32 = arith.constant 0 : i32
    %c0_i32_0 = arith.constant 0 : i32
    %c0_i32_1 = arith.constant 0 : i32
    return %c0_i32, %c0_i32_0 : i32, i32
  }
  func.func @transform_5(%arg0: i32) -> (i32, i32) {
    %c0_i32 = arith.constant 0 : i32
    %c0_i32_0 = arith.constant 0 : i32
    return %c0_i32, %arg0 : i32, i32
  }
}

</mosaic_0001>

<llo_original>
// kernel: tpu_custom_call.1
$region0: #{tpu_custom_call.1}
  #allocation0 [shape = 'u32[]', space=smem, size = 0x4, offset = 0x4, fixed_abs, tag = 'smem constant byte address 0x4 - core index']
  #allocation1 [shape = 'u32[144,128]{1,0:T(1,128)}', space=vmem, size = 0x12000, scoped, tag = 'internal scratch']
  %s0 = inlined_call_operand.vmem [shape: f32[6,128], index: 0, kind: input, shape index: {}]
  %s1 = inlined_call_operand.vmem [shape: f32[56,6], index: 1, kind: input, shape index: {}]
  %s2 = inlined_call_operand.vmem [shape: f32[56,1], index: 2, kind: input, shape index: {}]
  %s3 = inlined_call_operand.vmem [shape: f32[2,56], index: 3, kind: input, shape index: {}]
  %s4 = inlined_call_operand.vmem [shape: f32[2,1], index: 4, kind: input, shape index: {}]
  %s5 = inlined_call_operand.hbm [shape: f32[2,128], index: 5, kind: output, shape index: {}]
  %s6 = sld [smem:[#allocation0]]
  $region30: #{tpu_custom_call.1} parent=0
    _
  %s8 = ssub.s32 1, %s6
  %s9 = scalar_select 0, %s8, %s6
  $region1: #{tpu_custom_call.1} parent=0
    #allocation2 [shape = 'u8[1024]{0}', space=vmem, size = 0x400, scoped, tag = 'output window, operand 0, single buffered']
    #allocation3 [shape = 's32[1]{0}', space=sflag, size = 0x4, scoped, tag = 'scoped memory for tpu_custom_call.1']
    %10 = vsyncpa [#allocation3], 0
    // Predicated region
    $region2: #{tpu_custom_call.1} parent=1 // pred_check
      _
    $region3: #{tpu_custom_call.1} parent=1 // pred_check_branch
      %12 = sbr.rel (0) target = $region5
    $region4: #{tpu_custom_call.1} parent=1 // pred_region
      _
    $region5: #{tpu_custom_call.1} parent=1 // pred_fallthru
      _
    // Predicated region
    $region6: #{tpu_custom_call.1} parent=1 // pred_check
      _
    $region7: #{tpu_custom_call.1} parent=1 // pred_check_branch
      %14 = sbr.rel (0) target = $region9
    $region8: #{tpu_custom_call.1} parent=1 // pred_region
      _
    $region9: #{tpu_custom_call.1} parent=1 // pred_fallthru
      _
    // Predicated region
    $region10: #{tpu_custom_call.1} parent=1 // pred_check
      _
    $region11: #{tpu_custom_call.1} parent=1 // pred_check_branch
      %16 = sbr.rel (0) target = $region13
    $region12: #{tpu_custom_call.1} parent=1 // pred_region
      _
    $region13: #{tpu_custom_call.1} parent=1 // pred_fallthru
      _
    // Predicated region
    $region14: #{tpu_custom_call.1} parent=1 // pred_check
      _
    $region15: #{tpu_custom_call.1} parent=1 // pred_check_branch
      %18 = sbr.rel (0) target = $region17
    $region16: #{tpu_custom_call.1} parent=1 // pred_region
      _
    $region17: #{tpu_custom_call.1} parent=1 // pred_fallthru
      _
    // Predicated region
    $region18: #{tpu_custom_call.1} parent=1 // pred_check
      _
    $region19: #{tpu_custom_call.1} parent=1 // pred_check_branch
      %20 = sbr.rel (0) target = $region21
    $region20: #{tpu_custom_call.1} parent=1 // pred_region
      _
    $region21: #{tpu_custom_call.1} parent=1 // pred_fallthru
      _
    %v21 = vld [vmem:[%s0] sm:$0x3f]
    %v22 = vld [vmem:[%s2] sm:$0xff]
    %v23 = vld [vmem:[%s2 + $0x8] sm:$0xff]
    %v24 = vld [vmem:[%s2 + $0x10] sm:$0xff]
    %v25 = vld [vmem:[%s2 + $0x18] sm:$0xff]
    %v26 = vld [vmem:[%s2 + $0x20] sm:$0xff]
    %v27 = vld [vmem:[%s2 + $0x28] sm:$0xff]
    %v28 = vld [vmem:[%s2 + $0x30] sm:$0xff]
    %v29 = vld [vmem:[%s1] sm:$0xff]
    %v30 = vld [vmem:[%s1 + $0x8] sm:$0xff]
    %v31 = vld [vmem:[%s1 + $0x10] sm:$0xff]
    %v32 = vld [vmem:[%s1 + $0x18] sm:$0xff]
    %v33 = vld [vmem:[%s1 + $0x20] sm:$0xff]
    %v34 = vld [vmem:[%s1 + $0x28] sm:$0xff]
    %v35 = vld [vmem:[%s1 + $0x30] sm:$0xff]
    %37 = vset.pattern.permute.xlu0 0
    %38 = vperm.xlu0 %37, %v29
    %v39 = vpop.permute.xlu0 %38
    %42 = vset.pattern.permute.xlu0 0
    %43 = vperm.xlu0 %42, %v30
    %v44 = vpop.permute.xlu0 %43
    %47 = vset.pattern.permute.xlu0 0
    %48 = vperm.xlu0 %47, %v31
    %v49 = vpop.permute.xlu0 %48
    %52 = vset.pattern.permute.xlu0 0
    %53 = vperm.xlu0 %52, %v32
    %v54 = vpop.permute.xlu0 %53
    %57 = vset.pattern.permute.xlu0 0
    %58 = vperm.xlu0 %57, %v33
    %v59 = vpop.permute.xlu0 %58
    %62 = vset.pattern.permute.xlu0 0
    %63 = vperm.xlu0 %62, %v34
    %v64 = vpop.permute.xlu0 %63
    %67 = vset.pattern.permute.xlu0 0
    %68 = vperm.xlu0 %67, %v35
    %v69 = vpop.permute.xlu0 %68
    %v71 = vlaneseq
    %v72 = vshrl.u32 %v71, 7
    %v73 = vsub.s32 0, %v72
    %v74 = vrot.slane %v21, %v73
    %v75 = vmul.f32 %v39, %v74
    %v76 = vmul.f32 %v44, %v74
    %v77 = vmul.f32 %v49, %v74
    %v78 = vmul.f32 %v54, %v74
    %v79 = vmul.f32 %v59, %v74
    %v80 = vmul.f32 %v64, %v74
    %v81 = vmul.f32 %v69, %v74
    %83 = vset.pattern.permute.xlu0 0
    %84 = vperm.xlu0 %83, %v22
    %v85 = vpop.permute.xlu0 %84
    %88 = vset.pattern.permute.xlu0 0
    %89 = vperm.xlu0 %88, %v23
    %v90 = vpop.permute.xlu0 %89
    %93 = vset.pattern.permute.xlu0 0
    %94 = vperm.xlu0 %93, %v24
    %v95 = vpop.permute.xlu0 %94
    %98 = vset.pattern.permute.xlu0 0
    %99 = vperm.xlu0 %98, %v25
    %v100 = vpop.permute.xlu0 %99
    %103 = vset.pattern.permute.xlu0 0
    %104 = vperm.xlu0 %103, %v26
    %v105 = vpop.permute.xlu0 %104
    %108 = vset.pattern.permute.xlu0 0
    %109 = vperm.xlu0 %108, %v27
    %v110 = vpop.permute.xlu0 %109
    %113 = vset.pattern.permute.xlu0 0
    %114 = vperm.xlu0 %113, %v28
    %v115 = vpop.permute.xlu0 %114
    %v117 = vadd.f32 %v85, %v75
    %v118 = vadd.f32 %v90, %v76
    %v119 = vadd.f32 %v95, %v77
    %v120 = vadd.f32 %v100, %v78
    %v121 = vadd.f32 %v105, %v79
    %v122 = vadd.f32 %v110, %v80
    %v123 = vadd.f32 %v115, %v81
    %124 = vset.pattern.permute.xlu0 1
    %125 = vperm.xlu0 %124, %v29
    %v126 = vpop.permute.xlu0 %125
    %128 = vset.pattern.permute.xlu0 1
    %129 = vperm.xlu0 %128, %v30
    %v130 = vpop.permute.xlu0 %129
    %132 = vset.pattern.permute.xlu0 1
    %133 = vperm.xlu0 %132, %v31
    %v134 = vpop.permute.xlu0 %133
    %136 = vset.pattern.permute.xlu0 1
    %137 = vperm.xlu0 %136, %v32
    %v138 = vpop.permute.xlu0 %137
    %140 = vset.pattern.permute.xlu0 1
    %141 = vperm.xlu0 %140, %v33
    %v142 = vpop.permute.xlu0 %141
    %144 = vset.pattern.permute.xlu0 1
    %145 = vperm.xlu0 %144, %v34
    %v146 = vpop.permute.xlu0 %145
    %148 = vset.pattern.permute.xlu0 1
    %149 = vperm.xlu0 %148, %v35
    %v150 = vpop.permute.xlu0 %149
    %v152 = vlaneseq
    %v153 = vshrl.u32 %v152, 7
    %v154 = vsub.s32 1, %v153
    %v155 = vrot.slane %v21, %v154
    %v156 = vmul.f32 %v126, %v155
    %v157 = vmul.f32 %v130, %v155
    %v158 = vmul.f32 %v134, %v155
    %v159 = vmul.f32 %v138, %v155
    %v160 = vmul.f32 %v142, %v155
    %v161 = vmul.f32 %v146, %v155
    %v162 = vmul.f32 %v150, %v155
    %v163 = vadd.f32 %v117, %v156
    %v164 = vadd.f32 %v118, %v157
    %v165 = vadd.f32 %v119, %v158
    %v166 = vadd.f32 %v120, %v159
    %v167 = vadd.f32 %v121, %v160
    %v168 = vadd.f32 %v122, %v161
    %v169 = vadd.f32 %v123, %v162
    %170 = vset.pattern.permute.xlu0 2
    %171 = vperm.xlu0 %170, %v29
    %v172 = vpop.permute.xlu0 %171
    %174 = vset.pattern.permute.xlu0 2
    %175 = vperm.xlu0 %174, %v30
    %v176 = vpop.permute.xlu0 %175
    %178 = vset.pattern.permute.xlu0 2
    %179 = vperm.xlu0 %178, %v31
    %v180 = vpop.permute.xlu0 %179
    %182 = vset.pattern.permute.xlu0 2
    %183 = vperm.xlu0 %182, %v32
    %v184 = vpop.permute.xlu0 %183
    %186 = vset.pattern.permute.xlu0 2
    %187 = vperm.xlu0 %186, %v33
    %v188 = vpop.permute.xlu0 %187
    %190 = vset.pattern.permute.xlu0 2
    %191 = vperm.xlu0 %190, %v34
    %v192 = vpop.permute.xlu0 %191
    %194 = vset.pattern.permute.xlu0 2
    %195 = vperm.xlu0 %194, %v35
    %v196 = vpop.permute.xlu0 %195
    %v198 = vlaneseq
    %v199 = vshrl.u32 %v198, 7
    %v200 = vsub.s32 2, %v199
    %v201 = vrot.slane %v21, %v200
    %v202 = vmul.f32 %v172, %v201
    %v203 = vmul.f32 %v176, %v201
    %v204 = vmul.f32 %v180, %v201
    %v205 = vmul.f32 %v184, %v201
    %v206 = vmul.f32 %v188, %v201
    %v207 = vmul.f32 %v192, %v201
    %v208 = vmul.f32 %v196, %v201
    %v209 = vadd.f32 %v163, %v202
    %v210 = vadd.f32 %v164, %v203
    %v211 = vadd.f32 %v165, %v204
    %v212 = vadd.f32 %v166, %v205
    %v213 = vadd.f32 %v167, %v206
    %v214 = vadd.f32 %v168, %v207
    %v215 = vadd.f32 %v169, %v208
    %216 = vset.pattern.permute.xlu0 3
    %217 = vperm.xlu0 %216, %v29
    %v218 = vpop.permute.xlu0 %217
    %220 = vset.pattern.permute.xlu0 3
    %221 = vperm.xlu0 %220, %v30
    %v222 = vpop.permute.xlu0 %221
    %224 = vset.pattern.permute.xlu0 3
    %225 = vperm.xlu0 %224, %v31
    %v226 = vpop.permute.xlu0 %225
    %228 = vset.pattern.permute.xlu0 3
    %229 = vperm.xlu0 %228, %v32
    %v230 = vpop.permute.xlu0 %229
    %232 = vset.pattern.permute.xlu0 3
    %233 = vperm.xlu0 %232, %v33
    %v234 = vpop.permute.xlu0 %233
    %236 = vset.pattern.permute.xlu0 3
    %237 = vperm.xlu0 %236, %v34
    %v238 = vpop.permute.xlu0 %237
    %240 = vset.pattern.permute.xlu0 3
    %241 = vperm.xlu0 %240, %v35
    %v242 = vpop.permute.xlu0 %241
    %v244 = vlaneseq
    %v245 = vshrl.u32 %v244, 7
    %v246 = vsub.s32 3, %v245
    %v247 = vrot.slane %v21, %v246
    %v248 = vmul.f32 %v218, %v247
    %v249 = vmul.f32 %v222, %v247
    %v250 = vmul.f32 %v226, %v247
    %v251 = vmul.f32 %v230, %v247
    %v252 = vmul.f32 %v234, %v247
    %v253 = vmul.f32 %v238, %v247
    %v254 = vmul.f32 %v242, %v247
    %v255 = vadd.f32 %v209, %v248
    %v256 = vadd.f32 %v210, %v249
    %v257 = vadd.f32 %v211, %v250
    %v258 = vadd.f32 %v212, %v251
    %v259 = vadd.f32 %v213, %v252
    %v260 = vadd.f32 %v214, %v253
    %v261 = vadd.f32 %v215, %v254
    %262 = vset.pattern.permute.xlu0 4
    %263 = vperm.xlu0 %262, %v29
    %v264 = vpop.permute.xlu0 %263
    %266 = vset.pattern.permute.xlu0 4
    %267 = vperm.xlu0 %266, %v30
    %v268 = vpop.permute.xlu0 %267
    %270 = vset.pattern.permute.xlu0 4
    %271 = vperm.xlu0 %270, %v31
    %v272 = vpop.permute.xlu0 %271
    %274 = vset.pattern.permute.xlu0 4
    %275 = vperm.xlu0 %274, %v32
    %v276 = vpop.permute.xlu0 %275
    %278 = vset.pattern.permute.xlu0 4
    %279 = vperm.xlu0 %278, %v33
    %v280 = vpop.permute.xlu0 %279
    %282 = vset.pattern.permute.xlu0 4
    %283 = vperm.xlu0 %282, %v34
    %v284 = vpop.permute.xlu0 %283
    %286 = vset.pattern.permute.xlu0 4
    %287 = vperm.xlu0 %286, %v35
    %v288 = vpop.permute.xlu0 %287
    %v290 = vlaneseq
    %v291 = vshrl.u32 %v290, 7
    %v292 = vsub.s32 4, %v291
    %v293 = vrot.slane %v21, %v292
    %v294 = vmul.f32 %v264, %v293
    %v295 = vmul.f32 %v268, %v293
    %v296 = vmul.f32 %v272, %v293
    %v297 = vmul.f32 %v276, %v293
    %v298 = vmul.f32 %v280, %v293
    %v299 = vmul.f32 %v284, %v293
    %v300 = vmul.f32 %v288, %v293
    %v301 = vadd.f32 %v255, %v294
    %v302 = vadd.f32 %v256, %v295
    %v303 = vadd.f32 %v257, %v296
    %v304 = vadd.f32 %v258, %v297
    %v305 = vadd.f32 %v259, %v298
    %v306 = vadd.f32 %v260, %v299
    %v307 = vadd.f32 %v261, %v300
    %308 = vset.pattern.permute.xlu0 5
    %309 = vperm.xlu0 %308, %v29
    %v310 = vpop.permute.xlu0 %309
    %312 = vset.pattern.permute.xlu0 5
    %313 = vperm.xlu0 %312, %v30
    %v314 = vpop.permute.xlu0 %313
    %316 = vset.pattern.permute.xlu0 5
    %317 = vperm.xlu0 %316, %v31
    %v318 = vpop.permute.xlu0 %317
    %320 = vset.pattern.permute.xlu0 5
    %321 = vperm.xlu0 %320, %v32
    %v322 = vpop.permute.xlu0 %321
    %324 = vset.pattern.permute.xlu0 5
    %325 = vperm.xlu0 %324, %v33
    %v326 = vpop.permute.xlu0 %325
    %328 = vset.pattern.permute.xlu0 5
    %329 = vperm.xlu0 %328, %v34
    %v330 = vpop.permute.xlu0 %329
    %332 = vset.pattern.permute.xlu0 5
    %333 = vperm.xlu0 %332, %v35
    %v334 = vpop.permute.xlu0 %333
    %v336 = vlaneseq
    %v337 = vshrl.u32 %v336, 7
    %v338 = vsub.s32 5, %v337
    %v339 = vrot.slane %v21, %v338
    %v340 = vmul.f32 %v310, %v339
    %v341 = vmul.f32 %v314, %v339
    %v342 = vmul.f32 %v318, %v339
    %v343 = vmul.f32 %v322, %v339
    %v344 = vmul.f32 %v326, %v339
    %v345 = vmul.f32 %v330, %v339
    %v346 = vmul.f32 %v334, %v339
    %v347 = vadd.f32 %v301, %v340
    %v348 = vadd.f32 %v302, %v341
    %v349 = vadd.f32 %v303, %v342
    %v350 = vadd.f32 %v304, %v343
    %v351 = vadd.f32 %v305, %v344
    %v352 = vadd.f32 %v306, %v345
    %v353 = vadd.f32 %v307, %v346
    %v354 = vmax.f32 %v347, 0.0
    %v355 = vmax.f32 %v348, 0.0
    %v356 = vmax.f32 %v349, 0.0
    %v357 = vmax.f32 %v350, 0.0
    %v358 = vmax.f32 %v351, 0.0
    %v359 = vmax.f32 %v352, 0.0
    %v360 = vmax.f32 %v353, 0.0
    %v361 = vld [vmem:[%s3] sm:$0x3]
    %v362 = vld [vmem:[%s4] sm:$0x3]
    %364 = vset.pattern.permute.xlu0 0
    %365 = vperm.xlu0 %364, %v362
    %v366 = vpop.permute.xlu0 %365
    %vm368 = vcmask 457728
    %v370 = vsel %vm368, %v361, 0
    %372 = vmatprep.subr.mxu0 0.0
    %373 = vmatpush1.msra.mxu0 0.0
    %374 = vmatprep.subr.mxu0 0.0
    %375 = vmatpush1.msra.mxu0 0.0
    %376 = vmatprep.subr.mxu0 0.0
    %377 = vmatpush1.msra.mxu0 0.0
    %378 = vmatprep.subr.mxu0 0.0
    %379 = vmatpush1.msra.mxu0 0.0
    %380 = vmatprep.subr.mxu0 0.0
    %381 = vmatpush1.msra.mxu0 0.0
    %382 = vmatprep.subr.mxu0 0.0
    %383 = vmatpush1.msra.mxu0 0.0
    %384 = vmatprep.subr.mxu0 0.0
    %385 = vmatpush1.msra.mxu0 0.0
    %386 = vmatprep.subr.mxu0 0.0
    %387 = vmatpush1.msra.mxu0 0.0
    %388 = vmatprep.subr.mxu0 0.0
    %389 = vmatpush1.msra.mxu0 0.0
    %390 = vmatprep.subr.mxu0 0.0
    %391 = vmatpush1.msra.mxu0 %v360
    %392 = vmatprep.subr.mxu0 0.0
    %393 = vmatpush1.msra.mxu0 %v359
    %394 = vmatprep.subr.mxu0 0.0
    %395 = vmatpush1.msra.mxu0 %v358
    %396 = vmatprep.subr.mxu0 0.0
    %397 = vmatpush1.msra.mxu0 %v357
    %398 = vmatprep.subr.mxu0 0.0
    %399 = vmatpush1.msra.mxu0 %v356
    %400 = vmatprep.subr.mxu0 0.0
    %401 = vmatpush1.msra.mxu0 %v355
    %402 = vmatprep.subr.mxu0 0.0
    %403 = vmatpush1.msra.mxu0 %v354
    %404 = vmatprep.subr.mxu0 0.0
    %405 = vmatpush2.msra.mxu0 0.0
    %406 = vmatprep.subr.mxu0 0.0
    %407 = vmatpush2.msra.mxu0 0.0
    %408 = vmatprep.subr.mxu0 0.0
    %409 = vmatpush2.msra.mxu0 0.0
    %410 = vmatprep.subr.mxu0 0.0
    %411 = vmatpush2.msra.mxu0 0.0
    %412 = vmatprep.subr.mxu0 0.0
    %413 = vmatpush2.msra.mxu0 0.0
    %414 = vmatprep.subr.mxu0 0.0
    %415 = vmatpush2.msra.mxu0 0.0
    %416 = vmatprep.subr.mxu0 0.0
    %417 = vmatpush2.msra.mxu0 0.0
    %418 = vmatprep.subr.mxu0 0.0
    %419 = vmatpush2.msra.mxu0 0.0
    %420 = vmatprep.subr.mxu0 0.0
    %421 = vmatpush2.msra.mxu0 0.0
    %422 = vmatprep.subr.mxu0 0.0
    %423 = vmatpush2.msra.mxu0 0.0
    %424 = vmatprep.subr.mxu0 0.0
    %425 = vmatpush2.msra.mxu0 0.0
    %426 = vmatprep.subr.mxu0 0.0
    %427 = vmatpush2.msra.mxu0 0.0
    %428 = vmatprep.subr.mxu0 0.0
    %429 = vmatpush2.msra.mxu0 0.0
    %430 = vmatprep.subr.mxu0 0.0
    %431 = vmatpush2.msra.mxu0 0.0
    %432 = vmatprep.subr.mxu0 0.0
    %433 = vmatpush2.msra.mxu0 0.0
    %434 = vmatprep.subr.mxu0 0.0
    %435 = vmatpush2.msra.mxu0 0.0
    %436 = vmatprep.mubr.f32.mxu0 0.0
    %437 = vmatmul.mubr.f32.gmra.mxu0 %v370
    %v438 = vpop.f32.mrf.mxu0
    %v439 = vadd.f32 %v366, %v438
    %v440 = vpop.f32.mrf.mxu0
    %441 = vdwg.mxu0
    %v443 = vrot.slane %v439, 1
    %v445 = vmax.f32 %v439, %v443
    %v446 = vsub.f32 %v439, %v443
    %v447 = vand.u32 2147483647, %v446
    %v448 = vsub.f32 0.0, %v447
    %v449 = vmul.f32 %v448, 1.442695
    %v450 = vpow.pop %v449
    %v451 = vadd.f32 %v450, 1.0
    %v452 = vlog2.pop %v451
    %v453 = vmul.f32 %v452, 0.6931472
    %v454 = vadd.f32 %v445, %v453
    %v455 = vlaneseq
    %v456 = vshrl.u32 %v455, 7
    %v457 = vsub.s32 0, %v456
    %v458 = vrot.slane %v454, %v457
    %v459 = vsub.f32 %v439, %v458
    %460 = vst [vmem:[#allocation2] sm:$0x3] %v459
    // Predicated region
    $region22: #{tpu_custom_call.1} parent=1 // pred_check
      _
    $region23: #{tpu_custom_call.1} parent=1 // pred_check_branch
      %462 = sbr.rel (0) target = $region25
    $region24: #{tpu_custom_call.1} parent=1 // pred_region
      %s464 = ssub.s32 32, 32
      %465 = vsyncadd [#allocation3], %s464
      %s467 = sshll.u32 [#allocation2], 4
      %s468 = int_to_ptr.vmem [resolvable:$true] %s467
      %470 = dma.vmem_to_hbm [thread:$0]  %s468, 32, %s5, [#allocation3]
    $region25: #{tpu_custom_call.1} parent=1 // pred_fallthru
      _
    // Predicated region
    $region26: #{tpu_custom_call.1} parent=1 // pred_check
      _
    $region27: #{tpu_custom_call.1} parent=1 // pred_check_branch
      %472 = sbr.rel (0) target = $region29
    $region28: #{tpu_custom_call.1} parent=1 // pred_region
      %473 = dma.done [#allocation3], 32
    $region29: #{tpu_custom_call.1} parent=1 // pred_fallthru
      _
    %474 = vsyncpa [#allocation3], 1

</llo_original>
